<compile_context>
chip_gen: v7x
topology: tpu7x:2x2x1
jax: 0.10.0
libtpu: 0.0.40
codegen_flags: <defaults>
</compile_context>

<pallas_src>
import functools
import math

import jax
import jax.numpy as jnp
from jax.experimental import pallas as pl
from jax.experimental.pallas import tpu as pltpu


def _round_up(x, m):
    return ((x + m - 1) // m) * m


def mlp_kernel(x_ref, w1_ref, b1_ref, w2_ref, b2_ref, o_ref):
    # x_ref : (TB, K)   streamed batch tile
    # w1_ref: (K, H)    fc1 weight (pre-transposed / block-diag), VMEM-resident
    # b1_ref: (1, H)    fc1 bias, VMEM-resident
    # w2_ref: (H, N)    fc2 weight (pre-transposed / block-diag), VMEM-resident
    # b2_ref: (1, N)    fc2 bias, VMEM-resident
    # o_ref : (TB, N)   output tile
    x = x_ref[...]
    h = jnp.dot(x, w1_ref[...], preferred_element_type=jnp.float32) + b1_ref[...]
    h = jnp.maximum(h, 0.0)                                     # ReLU
    o = jnp.dot(h, w2_ref[...], preferred_element_type=jnp.float32) + b2_ref[...]
    o_ref[...] = o.astype(o_ref.dtype)


def _mlp_pallas(x2d, w1t, b1r, w2t, b2r, tile_rows):
    """1-D grid over the row axis; weights/biases stay VMEM-resident."""
    n_rows, k = x2d.shape
    h = w1t.shape[1]
    n_out = w2t.shape[1]
    assert n_rows % tile_rows == 0
    return pl.pallas_call(
        mlp_kernel,
        out_shape=jax.ShapeDtypeStruct((n_rows, n_out), jnp.float32),
        grid_spec=pl.GridSpec(
            grid=(n_rows // tile_rows,),
            in_specs=[
                pl.BlockSpec((tile_rows, k), lambda i: (i, 0)),  # streamed x tile
                pl.BlockSpec((k, h), lambda i: (0, 0)),          # resident fc1 W
                pl.BlockSpec((1, h), lambda i: (0, 0)),          # resident fc1 b
                pl.BlockSpec((h, n_out), lambda i: (0, 0)),      # resident fc2 W
                pl.BlockSpec((1, n_out), lambda i: (0, 0)),      # resident fc2 b
            ],
            out_specs=pl.BlockSpec((tile_rows, n_out), lambda i: (i, 0)),
        ),
        compiler_params=pltpu.CompilerParams(
            # Batch axis is embarrassingly parallel -> shards across TCs on v7x.
            dimension_semantics=("parallel",),
            # <= physical VMEM on every generation; lifts v5e's 16 MiB scoped
            # default so the larger tiles compile there too.
            vmem_limit_bytes=32 * 1024 * 1024,
        ),
    )(x2d, w1t, b1r, w2t, b2r)


@functools.partial(jax.jit, static_argnames=("block_rows",))
def simple_mlp(x, w1, b1, w2, b2, *, block_rows=32768):
    """SimpleMLP forward: relu(x @ w1.T + b1) @ w2.T + b2.

    x: (B, D_in).  w1: (H, D_in), b1: (H,).  w2: (D_out, H), b2: (D_out,).
    Returns (B, D_out) float32.
    """
    B, D_in = x.shape
    H = w1.shape[0]
    D_out = w2.shape[0]

    x = x.astype(jnp.float32)
    w1t = w1.T.astype(jnp.float32)                   # (D_in, H)
    b1r = b1.reshape(1, H).astype(jnp.float32)       # (1, H)
    w2t = w2.T.astype(jnp.float32)                   # (H, D_out)
    b2r = b2.reshape(1, D_out).astype(jnp.float32)   # (1, D_out)

    # Keep double-buffered x/out tiles + the h intermediate comfortably inside
    # scoped VMEM on every generation.
    bytes_per_row = 4 * (2 * D_in + 2 * H + 2 * D_out)
    max_rows = max(8, (24 * 1024 * 1024) // bytes_per_row)
    block_rows = max(8, min(block_rows, max_rows))

    # Lane-density packing factor: smallest G with (G * D_out) % 128 == 0 so the
    # output is written with unmasked 128-lane-dense stores (and x / h loads are
    # dense too).  Falls back to the plain layout when shapes don't permit it.
    g = 128 // math.gcd(128, D_out)
    use_pack = (
        g > 1
        and (g * D_in) % 128 == 0
        and (g * H) % 128 == 0
        and g * H <= 8192            # keep block-diagonal weights small/resident
        and B >= 8 * g               # at least one aligned packed tile of real rows
    )

    if use_pack:
        kp, hp, np_ = g * D_in, g * H, g * D_out
        eye = jnp.eye(g, dtype=jnp.float32)
        w1p = jnp.kron(eye, w1t)             # (kp, hp)  block-diagonal
        w2p = jnp.kron(eye, w2t)             # (hp, np_) block-diagonal
        b1p = jnp.tile(b1r, (1, g))          # (1, hp)
        b2p = jnp.tile(b2r, (1, g))          # (1, np_)

        # Tile size in packed rows: multiple of 8, ~block_rows original rows.
        tile_p = max(8, (block_rows // (8 * g)) * 8)
        tile_p = min(tile_p, _round_up(pl.cdiv(B, g), 8))
        Bp = _round_up(B, g * tile_p)
        xp = x if Bp == B else jnp.zeros((Bp, D_in), jnp.float32).at[:B].set(x)
        x_packed = xp.reshape(Bp // g, kp)   # free row-major reshape
        out = _mlp_pallas(x_packed, w1p, b1p, w2p, b2p, tile_p).reshape(Bp, D_out)
    else:
        if B <= block_rows:
            # Single-step fast path: full-array blocks, no padding, no slicing.
            tile, Bp = B, B
        else:
            tile = (block_rows // 8) * 8
            Bp = _round_up(B, tile)
        xp = x if Bp == B else jnp.zeros((Bp, D_in), jnp.float32).at[:B].set(x)
        out = _mlp_pallas(xp, w1t, b1r, w2t, b2r, tile)

    return out if Bp == B else out[:B]


def reference(x, w1, b1, w2, b2):
    # Pure-JAX reference matching PyTorch SimpleMLP.forward.  precision=HIGHEST
    # pins the eager matmuls to true-f32 accuracy so they match the kernel's f32
    # MXU path regardless of the platform-default matmul precision.
    hi = jax.lax.Precision.HIGHEST
    h = jnp.maximum(jnp.dot(x, w1.T, precision=hi) + b1, 0.0)
    return jnp.dot(h, w2.T, precision=hi) + b2


if __name__ == "__main__":
    # Small shapes consistent with the module: batch=2, input=16, hidden=32, out=8.
    B, D_in, H, D_out = 2, 16, 32, 8

    key = jax.random.PRNGKey(0)
    kx, kw1, kb1, kw2, kb2, kx2 = jax.random.split(key, 6)

    x = jax.random.normal(kx, (B, D_in), dtype=jnp.float32)
    w1 = 0.1 * jax.random.normal(kw1, (H, D_in), dtype=jnp.float32)   # fc1 weight
    b1 = 0.1 * jax.random.normal(kb1, (H,), dtype=jnp.float32)        # fc1 bias
    w2 = 0.1 * jax.random.normal(kw2, (D_out, H), dtype=jnp.float32)  # fc2 weight
    b2 = 0.1 * jax.random.normal(kb2, (D_out,), dtype=jnp.float32)    # fc2 bias

    # Tiny batch -> single-step, no-padding fast path.
    out = jax.block_until_ready(simple_mlp(x, w1, b1, w2, b2))
    ref = reference(x, w1, b1, w2, b2)
    assert out.shape == (B, D_out)
    assert jnp.allclose(out, ref, atol=1e-5, rtol=1e-5), "mismatch vs reference (small batch)"

    # Larger batch -> exercises the lane-dense packed (block-diagonal) path.
    B2 = 512
    x2 = jax.random.normal(kx2, (B2, D_in), dtype=jnp.float32)
    out2 = jax.block_until_ready(simple_mlp(x2, w1, b1, w2, b2))
    ref2 = reference(x2, w1, b1, w2, b2)
    assert out2.shape == (B2, D_out)
    assert jnp.allclose(out2, ref2, atol=1e-5, rtol=1e-5), "mismatch vs reference (packed path)"

    print("KERNEL_OK")
</pallas_src>

<mosaic_0001>
module attributes {stable_mosaic.version = 11 : i64} {
  func.func @mlp_kernel(%arg0: i32, %arg1: memref<2x16xf32, #tpu.memory_space<vmem>>, %arg2: memref<16x32xf32, #tpu.memory_space<vmem>>, %arg3: memref<1x32xf32, #tpu.memory_space<vmem>>, %arg4: memref<32x8xf32, #tpu.memory_space<vmem>>, %arg5: memref<1x8xf32, #tpu.memory_space<vmem>>, %arg6: memref<2x8xf32, #tpu.memory_space<vmem>>) attributes {dimension_semantics = [#tpu.dimension_semantics<parallel>], iteration_bounds = array<i64: 1>, scalar_prefetch = 0 : i64, scratch_operands = 0 : i64, tpu.core_type = #tpu.core_type<tc>, window_params = [{transform_indices = @transform_0, window_bounds = array<i64: 2, 16>}, {pipeline_mode = #tpu.pipeline_mode<synchronous>, transform_indices = @transform_1, window_bounds = array<i64: 16, 32>}, {pipeline_mode = #tpu.pipeline_mode<synchronous>, transform_indices = @transform_2, window_bounds = array<i64: 1, 32>}, {pipeline_mode = #tpu.pipeline_mode<synchronous>, transform_indices = @transform_3, window_bounds = array<i64: 32, 8>}, {pipeline_mode = #tpu.pipeline_mode<synchronous>, transform_indices = @transform_4, window_bounds = array<i64: 1, 8>}, {transform_indices = @transform_5, window_bounds = array<i64: 2, 8>}]} {
    %c0 = arith.constant 0 : index
    %c0_0 = arith.constant 0 : index
    %0 = vector.load %arg1[%c0, %c0_0] : memref<2x16xf32, #tpu.memory_space<vmem>>, vector<2x16xf32>
    %c0_1 = arith.constant 0 : index
    %c0_2 = arith.constant 0 : index
    %1 = vector.load %arg2[%c0_1, %c0_2] : memref<16x32xf32, #tpu.memory_space<vmem>>, vector<16x32xf32>
    %cst = arith.constant dense<0.000000e+00> : vector<2x32xf32>
    %2 = tpu.matmul %0, %1, %cst {dimension_numbers = #tpu.dot_dimension_numbers<[1], [0], [0], [1], [0, 0, 1, 1], [], []>} : vector<2x16xf32>, vector<16x32xf32>, vector<2x32xf32> -> vector<2x32xf32>
    %c0_3 = arith.constant 0 : index
    %c0_4 = arith.constant 0 : index
    %3 = vector.load %arg3[%c0_3, %c0_4] : memref<1x32xf32, #tpu.memory_space<vmem>>, vector<1x32xf32>
    %4 = vector.broadcast %3 : vector<1x32xf32> to vector<2x32xf32>
    %5 = arith.addf %2, %4 : vector<2x32xf32>
    %cst_5 = arith.constant 0.000000e+00 : f32
    %6 = vector.broadcast %cst_5 : f32 to vector<2x32xf32>
    %7 = arith.maximumf %5, %6 : vector<2x32xf32>
    %c0_6 = arith.constant 0 : index
    %c0_7 = arith.constant 0 : index
    %8 = vector.load %arg4[%c0_6, %c0_7] : memref<32x8xf32, #tpu.memory_space<vmem>>, vector<32x8xf32>
    %cst_8 = arith.constant dense<0.000000e+00> : vector<2x8xf32>
    %9 = tpu.matmul %7, %8, %cst_8 {dimension_numbers = #tpu.dot_dimension_numbers<[1], [0], [0], [1], [0, 0, 1, 1], [], []>} : vector<2x32xf32>, vector<32x8xf32>, vector<2x8xf32> -> vector<2x8xf32>
    %c0_9 = arith.constant 0 : index
    %c0_10 = arith.constant 0 : index
    %10 = vector.load %arg5[%c0_9, %c0_10] : memref<1x8xf32, #tpu.memory_space<vmem>>, vector<1x8xf32>
    %11 = vector.broadcast %10 : vector<1x8xf32> to vector<2x8xf32>
    %12 = arith.addf %9, %11 : vector<2x8xf32>
    %c0_11 = arith.constant 0 : index
    %c0_12 = arith.constant 0 : index
    %13 = vector.load %arg6[%c0_11, %c0_12] : memref<2x8xf32, #tpu.memory_space<vmem>>, vector<2x8xf32>
    tpu.vector_store %arg6[%c0_11, %c0_12], %12 {strides = array<i32>} : memref<2x8xf32, #tpu.memory_space<vmem>>, vector<2x8xf32>,
    return
  }
  func.func @transform_0(%arg0: i32) -> (i32, i32) {
    %c0_i32 = arith.constant 0 : i32
    %c0_i32_0 = arith.constant 0 : i32
    return %arg0, %c0_i32 : i32, i32
  }
  func.func @transform_1(%arg0: i32) -> (i32, i32) {
    %c0_i32 = arith.constant 0 : i32
    %c0_i32_0 = arith.constant 0 : i32
    %c0_i32_1 = arith.constant 0 : i32
    return %c0_i32, %c0_i32_0 : i32, i32
  }
  func.func @transform_2(%arg0: i32) -> (i32, i32) {
    %c0_i32 = arith.constant 0 : i32
    %c0_i32_0 = arith.constant 0 : i32
    %c0_i32_1 = arith.constant 0 : i32
    return %c0_i32, %c0_i32_0 : i32, i32
  }
  func.func @transform_3(%arg0: i32) -> (i32, i32) {
    %c0_i32 = arith.constant 0 : i32
    %c0_i32_0 = arith.constant 0 : i32
    %c0_i32_1 = arith.constant 0 : i32
    return %c0_i32, %c0_i32_0 : i32, i32
  }
  func.func @transform_4(%arg0: i32) -> (i32, i32) {
    %c0_i32 = arith.constant 0 : i32
    %c0_i32_0 = arith.constant 0 : i32
    %c0_i32_1 = arith.constant 0 : i32
    return %c0_i32, %c0_i32_0 : i32, i32
  }
  func.func @transform_5(%arg0: i32) -> (i32, i32) {
    %c0_i32 = arith.constant 0 : i32
    %c0_i32_0 = arith.constant 0 : i32
    return %arg0, %c0_i32 : i32, i32
  }
}

</mosaic_0001>

<llo_original>
// kernel: simple_mlp.1
$region0: #{simple_mlp.1}
  #allocation0 [shape = 'u32[]', space=smem, size = 0x4, offset = 0x4, fixed_abs, tag = 'smem constant byte address 0x4 - core index']
  #allocation1 [shape = 'u32[144,128]{1,0:T(1,128)}', space=vmem, size = 0x12000, scoped, tag = 'internal scratch']
  %s0 = inlined_call_operand.vmem [shape: f32[2,16], index: 0, kind: input, shape index: {}]
  %s1 = inlined_call_operand.vmem [shape: f32[16,32], index: 1, kind: input, shape index: {}]
  %s2 = inlined_call_operand.vmem [shape: f32[1,32], index: 2, kind: input, shape index: {}]
  %s3 = inlined_call_operand.vmem [shape: f32[32,8], index: 3, kind: input, shape index: {}]
  %s4 = inlined_call_operand.vmem [shape: f32[1,8], index: 4, kind: input, shape index: {}]
  %s5 = inlined_call_operand.hbm [shape: f32[2,8], index: 5, kind: output, shape index: {}]
  %s6 = sld [smem:[#allocation0]]
  $region30: #{simple_mlp.1} parent=0
    _
  %s8 = ssub.s32 1, %s6
  %s9 = scalar_select 0, %s8, %s6
  $region1: #{simple_mlp.1} parent=0
    #allocation2 [shape = 'u8[1024]{0}', space=vmem, size = 0x400, scoped, tag = 'output window, operand 0, single buffered']
    #allocation3 [shape = 's32[1]{0}', space=sflag, size = 0x4, scoped, tag = 'scoped memory for simple_mlp.1']
    %10 = vsyncpa [#allocation3], 0
    // Predicated region
    $region2: #{simple_mlp.1} parent=1 // pred_check
      _
    $region3: #{simple_mlp.1} parent=1 // pred_check_branch
      %12 = sbr.rel (0) target = $region5
    $region4: #{simple_mlp.1} parent=1 // pred_region
      _
    $region5: #{simple_mlp.1} parent=1 // pred_fallthru
      _
    // Predicated region
    $region6: #{simple_mlp.1} parent=1 // pred_check
      _
    $region7: #{simple_mlp.1} parent=1 // pred_check_branch
      %14 = sbr.rel (0) target = $region9
    $region8: #{simple_mlp.1} parent=1 // pred_region
      _
    $region9: #{simple_mlp.1} parent=1 // pred_fallthru
      _
    // Predicated region
    $region10: #{simple_mlp.1} parent=1 // pred_check
      _
    $region11: #{simple_mlp.1} parent=1 // pred_check_branch
      %16 = sbr.rel (0) target = $region13
    $region12: #{simple_mlp.1} parent=1 // pred_region
      _
    $region13: #{simple_mlp.1} parent=1 // pred_fallthru
      _
    // Predicated region
    $region14: #{simple_mlp.1} parent=1 // pred_check
      _
    $region15: #{simple_mlp.1} parent=1 // pred_check_branch
      %18 = sbr.rel (0) target = $region17
    $region16: #{simple_mlp.1} parent=1 // pred_region
      _
    $region17: #{simple_mlp.1} parent=1 // pred_fallthru
      _
    // Predicated region
    $region18: #{simple_mlp.1} parent=1 // pred_check
      _
    $region19: #{simple_mlp.1} parent=1 // pred_check_branch
      %20 = sbr.rel (0) target = $region21
    $region20: #{simple_mlp.1} parent=1 // pred_region
      _
    $region21: #{simple_mlp.1} parent=1 // pred_fallthru
      _
    %v21 = vld [vmem:[%s0] sm:$0x3]
    %v22 = vld [vmem:[%s1] sm:$0xff]
    %v23 = vld [vmem:[%s1 + $0x8] sm:$0xff]
    %v24 = vld [vmem:[%s2] sm:$0x1]
    %v26 = vlaneseq
    %v27 = vshrl.u32 %v26, 7
    %v28 = vsub.s32 0, %v27
    %v29 = vrot.slane %v24, %v28
    %vm31 = vcmask 130048
    %v33 = vsel %vm31, %v21, 0
    %35 = vmatprep.subr.mxu0 0.0
    %36 = vmatpush1.msra.mxu0 %v22
    %37 = vmatprep.subr.mxu0 0.0
    %38 = vmatpush1.msra.mxu0 %v23
    %39 = vmatprep.subr.mxu0 0.0
    %40 = vmatpush1.msra.mxu0 0.0
    %41 = vmatprep.subr.mxu0 0.0
    %42 = vmatpush1.msra.mxu0 0.0
    %43 = vmatprep.subr.mxu0 0.0
    %44 = vmatpush1.msra.mxu0 0.0
    %45 = vmatprep.subr.mxu0 0.0
    %46 = vmatpush1.msra.mxu0 0.0
    %47 = vmatprep.subr.mxu0 0.0
    %48 = vmatpush1.msra.mxu0 0.0
    %49 = vmatprep.subr.mxu0 0.0
    %50 = vmatpush1.msra.mxu0 0.0
    %51 = vmatprep.subr.mxu0 0.0
    %52 = vmatpush1.msra.mxu0 0.0
    %53 = vmatprep.subr.mxu0 0.0
    %54 = vmatpush1.msra.mxu0 0.0
    %55 = vmatprep.subr.mxu0 0.0
    %56 = vmatpush1.msra.mxu0 0.0
    %57 = vmatprep.subr.mxu0 0.0
    %58 = vmatpush1.msra.mxu0 0.0
    %59 = vmatprep.subr.mxu0 0.0
    %60 = vmatpush1.msra.mxu0 0.0
    %61 = vmatprep.subr.mxu0 0.0
    %62 = vmatpush1.msra.mxu0 0.0
    %63 = vmatprep.subr.mxu0 0.0
    %64 = vmatpush1.msra.mxu0 0.0
    %65 = vmatprep.subr.mxu0 0.0
    %66 = vmatpush1.msra.mxu0 0.0
    %67 = vmatprep.subr.mxu0 0.0
    %68 = vmatpush1.msra.mxu0 0.0
    %69 = vmatprep.subr.mxu0 0.0
    %70 = vmatpush1.msra.mxu0 0.0
    %71 = vmatprep.subr.mxu0 0.0
    %72 = vmatpush1.msra.mxu0 0.0
    %73 = vmatprep.subr.mxu0 0.0
    %74 = vmatpush1.msra.mxu0 0.0
    %75 = vmatprep.subr.mxu0 0.0
    %76 = vmatpush1.msra.mxu0 0.0
    %77 = vmatprep.subr.mxu0 0.0
    %78 = vmatpush1.msra.mxu0 0.0
    %79 = vmatprep.subr.mxu0 0.0
    %80 = vmatpush1.msra.mxu0 0.0
    %81 = vmatprep.subr.mxu0 0.0
    %82 = vmatpush1.msra.mxu0 0.0
    %83 = vmatprep.subr.mxu0 0.0
    %84 = vmatpush1.msra.mxu0 0.0
    %85 = vmatprep.subr.mxu0 0.0
    %86 = vmatpush1.msra.mxu0 0.0
    %87 = vmatprep.subr.mxu0 0.0
    %88 = vmatpush1.msra.mxu0 0.0
    %89 = vmatprep.subr.mxu0 0.0
    %90 = vmatpush1.msra.mxu0 0.0
    %91 = vmatprep.subr.mxu0 0.0
    %92 = vmatpush1.msra.mxu0 0.0
    %93 = vmatprep.subr.mxu0 0.0
    %94 = vmatpush1.msra.mxu0 0.0
    %95 = vmatprep.subr.mxu0 0.0
    %96 = vmatpush1.msra.mxu0 0.0
    %97 = vmatprep.subr.mxu0 0.0
    %98 = vmatpush1.msra.mxu0 0.0
    %99 = vmatprep.mubr.f32.mxu0 0.0
    %100 = vmatmul.mubr.f32.gmra.mrb[0].mxu0 %v33
    %v101 = vpop.f32.mrb[0].mxu0
    %v102 = vadd.f32 %v29, %v101
    %v103 = vpop.f32.mrb[0].mxu0
    %104 = vdwg.mxu0
    %v105 = vmax.f32 %v102, 0.0
    %v106 = vld [vmem:[%s3] sm:$0xff]
    %v107 = vld [vmem:[%s3 + $0x8] sm:$0xff]
    %v108 = vld [vmem:[%s3 + $0x10] sm:$0xff]
    %v109 = vld [vmem:[%s3 + $0x18] sm:$0xff]
    %v110 = vld [vmem:[%s4] sm:$0x1]
    %v112 = vlaneseq
    %v113 = vshrl.u32 %v112, 7
    %v114 = vsub.s32 0, %v113
    %v115 = vrot.slane %v110, %v114
    %vm117 = vcmask 261120
    %v119 = vsel %vm117, %v105, 0
    %121 = vmatprep.subr.mxu0 0.0
    %122 = vmatpush1.msra.mxu0 %v106
    %123 = vmatprep.subr.mxu0 0.0
    %124 = vmatpush1.msra.mxu0 %v107
    %125 = vmatprep.subr.mxu0 0.0
    %126 = vmatpush1.msra.mxu0 %v108
    %127 = vmatprep.subr.mxu0 0.0
    %128 = vmatpush1.msra.mxu0 %v109
    %129 = vmatprep.subr.mxu0 0.0
    %130 = vmatpush1.msra.mxu0 0.0
    %131 = vmatprep.subr.mxu0 0.0
    %132 = vmatpush1.msra.mxu0 0.0
    %133 = vmatprep.subr.mxu0 0.0
    %134 = vmatpush1.msra.mxu0 0.0
    %135 = vmatprep.subr.mxu0 0.0
    %136 = vmatpush1.msra.mxu0 0.0
    %137 = vmatprep.subr.mxu0 0.0
    %138 = vmatpush1.msra.mxu0 0.0
    %139 = vmatprep.subr.mxu0 0.0
    %140 = vmatpush1.msra.mxu0 0.0
    %141 = vmatprep.subr.mxu0 0.0
    %142 = vmatpush1.msra.mxu0 0.0
    %143 = vmatprep.subr.mxu0 0.0
    %144 = vmatpush1.msra.mxu0 0.0
    %145 = vmatprep.subr.mxu0 0.0
    %146 = vmatpush1.msra.mxu0 0.0
    %147 = vmatprep.subr.mxu0 0.0
    %148 = vmatpush1.msra.mxu0 0.0
    %149 = vmatprep.subr.mxu0 0.0
    %150 = vmatpush1.msra.mxu0 0.0
    %151 = vmatprep.subr.mxu0 0.0
    %152 = vmatpush1.msra.mxu0 0.0
    %153 = vmatprep.subr.mxu0 0.0
    %154 = vmatpush1.msra.mxu0 0.0
    %155 = vmatprep.subr.mxu0 0.0
    %156 = vmatpush1.msra.mxu0 0.0
    %157 = vmatprep.subr.mxu0 0.0
    %158 = vmatpush1.msra.mxu0 0.0
    %159 = vmatprep.subr.mxu0 0.0
    %160 = vmatpush1.msra.mxu0 0.0
    %161 = vmatprep.subr.mxu0 0.0
    %162 = vmatpush1.msra.mxu0 0.0
    %163 = vmatprep.subr.mxu0 0.0
    %164 = vmatpush1.msra.mxu0 0.0
    %165 = vmatprep.subr.mxu0 0.0
    %166 = vmatpush1.msra.mxu0 0.0
    %167 = vmatprep.subr.mxu0 0.0
    %168 = vmatpush1.msra.mxu0 0.0
    %169 = vmatprep.subr.mxu0 0.0
    %170 = vmatpush1.msra.mxu0 0.0
    %171 = vmatprep.subr.mxu0 0.0
    %172 = vmatpush1.msra.mxu0 0.0
    %173 = vmatprep.subr.mxu0 0.0
    %174 = vmatpush1.msra.mxu0 0.0
    %175 = vmatprep.subr.mxu0 0.0
    %176 = vmatpush1.msra.mxu0 0.0
    %177 = vmatprep.subr.mxu0 0.0
    %178 = vmatpush1.msra.mxu0 0.0
    %179 = vmatprep.subr.mxu0 0.0
    %180 = vmatpush1.msra.mxu0 0.0
    %181 = vmatprep.subr.mxu0 0.0
    %182 = vmatpush1.msra.mxu0 0.0
    %183 = vmatprep.subr.mxu0 0.0
    %184 = vmatpush1.msra.mxu0 0.0
    %185 = vmatprep.mubr.f32.mxu0 0.0
    %186 = vmatmul.mubr.f32.gmra.mrb[0].mxu0 %v119
    %v187 = vpop.f32.mrb[0].mxu0
    %v188 = vadd.f32 %v115, %v187
    %v189 = vpop.f32.mrb[0].mxu0
    %190 = vdwg.mxu0
    %vm191 = vcmask 58368
    %192 = vst.msk [vmem:[#allocation2] sm:$0x3] %vm191, %v188
    // Predicated region
    $region22: #{simple_mlp.1} parent=1 // pred_check
      _
    $region23: #{simple_mlp.1} parent=1 // pred_check_branch
      %194 = sbr.rel (0) target = $region25
    $region24: #{simple_mlp.1} parent=1 // pred_region
      %s196 = ssub.s32 32, 32
      %197 = vsyncadd [#allocation3], %s196
      %s199 = sshll.u32 [#allocation2], 4
      %s200 = int_to_ptr.vmem [resolvable:$true] %s199
      %202 = dma.vmem_to_hbm [thread:$0]  %s200, 32, %s5, [#allocation3]
    $region25: #{simple_mlp.1} parent=1 // pred_fallthru
      _
    // Predicated region
    $region26: #{simple_mlp.1} parent=1 // pred_check
      _
    $region27: #{simple_mlp.1} parent=1 // pred_check_branch
      %204 = sbr.rel (0) target = $region29
    $region28: #{simple_mlp.1} parent=1 // pred_region
      %205 = dma.done [#allocation3], 32
    $region29: #{simple_mlp.1} parent=1 // pred_fallthru
      _
    %206 = vsyncpa [#allocation3], 1

</llo_original>
